<compile_context>
chip_gen: v7x
topology: tpu7x:2x2x1
jax: 0.10.0
libtpu: 0.0.40
codegen_flags: <defaults>
</compile_context>

<pallas_src>
import functools

import jax
import jax.numpy as jnp
from jax.experimental import pallas as pl
from jax.experimental.pallas import tpu as pltpu

LN_EPS = 1e-5          # PyTorch nn.LayerNorm default
LANE = 128
SUBLANE = 8
BF16_SUBLANE = 16      # bf16 packs 2 rows per sublane


def _round_up(x, m):
    return (x + m - 1) // m * m


def _pad2(a, rows, cols):
    return jnp.pad(a, ((0, rows - a.shape[0]), (0, cols - a.shape[1])))


# ---------------------------------------------------------------------------
# Kernel
# ---------------------------------------------------------------------------
def _ln_relu(h, gamma, beta, n_valid, n_pad):
    """Fused LayerNorm(+affine)+ReLU over the last axis of an f32 tile.

    Padded feature columns of h are exactly zero (zero-padded weight columns and
    biases), so:
      * mean over valid columns = sum(h) / n_valid,
      * sum((h - mean)^2) over ALL columns = valid SSE + n_pad * mean^2, which we
        subtract for an exact, well-conditioned variance (avoids the E[h^2]-mean^2
        cancellation of the previous single-pass form).
    Padded gamma/beta columns are zero -> padded outputs remain exactly zero.
    """
    inv_n = 1.0 / float(n_valid)
    mean = jnp.sum(h, axis=-1, keepdims=True) * inv_n
    d = h - mean
    var = (jnp.sum(d * d, axis=-1, keepdims=True)
           - float(n_pad) * mean * mean) * inv_n
    var = jnp.maximum(var, 0.0)
    scale = gamma * jax.lax.rsqrt(var + LN_EPS)   # gamma folded into inv-std (EUP rsqrt)
    return jnp.maximum(d * scale + beta, 0.0)


def actor_kernel(x_ref,
                 w1_ref, v1_ref,
                 w2_ref, v2_ref,
                 wmu_ref, vmu_ref,
                 o_ref, *, n1, n2):
    # x is already cast to the weight dtype in the wrapper (half the streamed bytes,
    # no per-step VPU cast).  All matmuls accumulate in f32 on the MXU.
    f1 = w1_ref.shape[1]
    f2 = w2_ref.shape[1]

    v1 = v1_ref[...]    # (8, F1) f32: rows [bias, gamma, beta, 0, ...]
    v2 = v2_ref[...]    # (8, F2) f32
    vmu = vmu_ref[...]  # (8, AP) f32: row 0 = mu bias

    # fc1 -> LayerNorm -> ReLU
    h = jnp.dot(x_ref[...], w1_ref[...],
                preferred_element_type=jnp.float32) + v1[0:1]
    h = _ln_relu(h, v1[1:2], v1[2:3], n1, f1 - n1)

    # fc2 -> LayerNorm -> ReLU
    h = jnp.dot(h.astype(w2_ref.dtype), w2_ref[...],
                preferred_element_type=jnp.float32) + v2[0:1]
    h = _ln_relu(h, v2[1:2], v2[2:3], n2, f2 - n2)

    # mu (output linear, no activation)
    out = jnp.dot(h.astype(wmu_ref.dtype), wmu_ref[...],
                  preferred_element_type=jnp.float32) + vmu[0:1]
    o_ref[...] = out.astype(o_ref.dtype)
    # TODO(synk): interleave two TB/2 sub-tiles (dot on half B while LN+ReLU runs on
    # half A) so MXU pushes co-issue with the VPU/XLU LayerNorm work.


# ---------------------------------------------------------------------------
# One-time parameter preparation (do NOT call per forward step)
# ---------------------------------------------------------------------------
def prepare_params(params, param_dtype=jnp.bfloat16):
    """Pad + cast logical-shape params to the lane-dense kernel layout ONCE.

    Matmul weights -> `param_dtype`; bias/gamma/beta of each layer packed into a
    single (8, F) f32 slab (one resident DMA per layer instead of three slivers).
    Padded columns are exactly zero, which the in-kernel LayerNorm relies on.
    """
    D_in, FC1 = params["w1"].shape
    FC2 = params["w2"].shape[1]
    A = params["wmu"].shape[1]
    F1, F2, AP = (_round_up(n, LANE) for n in (FC1, FC2, A))

    def pack_vecs(rows, f):
        slab = jnp.zeros((SUBLANE, f), jnp.float32)
        for i, r in enumerate(rows):
            slab = slab.at[i, : r.shape[-1]].set(
                r.reshape(-1).astype(jnp.float32))
        return slab

    prepared = {
        "w1": _pad2(params["w1"], D_in, F1).astype(param_dtype),
        "v1": pack_vecs([params["b1"], params["g1"], params["be1"]], F1),
        "w2": _pad2(params["w2"], F1, F2).astype(param_dtype),
        "v2": pack_vecs([params["b2"], params["g2"], params["be2"]], F2),
        "wmu": _pad2(params["wmu"], F2, AP).astype(param_dtype),
        "vmu": pack_vecs([params["bmu"]], AP),
    }
    meta = {"d_in": D_in, "n1": FC1, "n2": FC2, "a": A}
    return prepared, meta


# ---------------------------------------------------------------------------
# Forward wrapper
# ---------------------------------------------------------------------------
def _derive_tb(batch, block_b):
    """Batch tile: multiple of 16 (bf16 sublane packing).  When the batch allows,
    keep at least 2 grid steps so the 'parallel' axis spans both v7x TensorCores."""
    tb = min(_round_up(block_b, BF16_SUBLANE), _round_up(batch, BF16_SUBLANE))
    if batch > BF16_SUBLANE and _round_up(batch, tb) // tb < 2:
        tb = _round_up((batch + 1) // 2, BF16_SUBLANE)
    return tb


def _vmem_limit_bytes(tb, d_in, f1, f2, ap, w_bytes, x_bytes, o_bytes):
    resident = (d_in * f1 + f1 * f2 + f2 * ap) * w_bytes \
               + SUBLANE * (f1 + f2 + ap) * 4
    streamed = 2 * tb * (d_in * x_bytes + ap * o_bytes)   # double-buffered I/O tiles
    interm = 3 * tb * max(f1, f2, ap) * 4                  # live f32 intermediates
    est = resident + streamed + interm
    # 2x headroom, floor 32 MiB, cap 48 MiB (safe under v7x's 64 MiB physical VMEM).
    return int(min(max(2 * est + (4 << 20), 32 << 20), 48 << 20))


def actor_forward(state, prepared, meta, *, block_b=256, out_dtype=jnp.float32):
    """state: (B, D_in); prepared/meta from prepare_params (padded/cast once)."""
    B, D_in = state.shape
    assert D_in == meta["d_in"], "state feature dim mismatch"
    F1 = prepared["w1"].shape[1]
    F2 = prepared["w2"].shape[1]
    AP = prepared["wmu"].shape[1]
    w_dtype = prepared["w1"].dtype

    # block_b=256 fills the 2x256x256 MXU on v6e/v7x; on v5e (4x128x128) the larger
    # tile still helps by amortizing the ~600-cycle per-grid-step overhead.
    TB = _derive_tb(B, block_b)
    Bp = _round_up(B, TB)
    x = state.astype(w_dtype)                 # cast once in the wrapper
    if Bp != B:
        x = jnp.pad(x, ((0, Bp - B), (0, 0)))

    grid = (Bp // TB,)

    def tile_rows(i):
        return (i, 0)

    def resident_spec(shape, single_buffer):
        if single_buffer:
            return pl.BlockSpec(shape, lambda i: (0, 0),
                                pipeline_mode=pl.Buffered(1))
        return pl.BlockSpec(shape, lambda i: (0, 0))

    def build(single_buffer):
        in_specs = [
            pl.BlockSpec((TB, D_in), tile_rows),              # state tile (streamed)
            resident_spec((D_in, F1), single_buffer),          # w1
            resident_spec((SUBLANE, F1), single_buffer),       # [b1; g1; be1]
            resident_spec((F1, F2), single_buffer),            # w2
            resident_spec((SUBLANE, F2), single_buffer),       # [b2; g2; be2]
            resident_spec((F2, AP), single_buffer),            # wmu
            resident_spec((SUBLANE, AP), single_buffer),       # [bmu]
        ]
        out_spec = pl.BlockSpec((TB, AP), tile_rows)
        kernel = functools.partial(actor_kernel, n1=meta["n1"], n2=meta["n2"])
        return pl.pallas_call(
            kernel,
            out_shape=jax.ShapeDtypeStruct((Bp, AP), out_dtype),
            grid=grid,
            in_specs=in_specs,
            out_specs=out_spec,
            compiler_params=pltpu.CompilerParams(
                dimension_semantics=("parallel",),
                vmem_limit_bytes=_vmem_limit_bytes(
                    TB, D_in, F1, F2, AP,
                    jnp.dtype(w_dtype).itemsize,
                    jnp.dtype(w_dtype).itemsize,
                    jnp.dtype(out_dtype).itemsize)),
        )

    args = (x, prepared["w1"], prepared["v1"], prepared["w2"], prepared["v2"],
            prepared["wmu"], prepared["vmu"])
    try:
        out_padded = build(single_buffer=True)(*args)
    except Exception:
        # Fallback if this jax build rejects pl.Buffered(1) on resident inputs.
        out_padded = build(single_buffer=False)(*args)

    # Slice batch / action padding off outside the kernel (lane-dense stores inside).
    return out_padded[:B, :meta["a"]]


# ---------------------------------------------------------------------------
# Init + pure-JAX reference
# ---------------------------------------------------------------------------
def init_params(key, input_dim, fc1_dims, fc2_dims, action_dim):
    """Deterministic synthetic init (PyTorch-Linear-style uniform bounds), logical shapes."""
    ks = jax.random.split(key, 6)

    def lin(kw, kb, fan_in, fan_out):
        bound = 1.0 / jnp.sqrt(fan_in)
        w = jax.random.uniform(kw, (fan_in, fan_out), jnp.float32, -bound, bound)
        b = jax.random.uniform(kb, (1, fan_out), jnp.float32, -bound, bound)
        return w, b

    w1, b1 = lin(ks[0], ks[1], input_dim, fc1_dims)
    w2, b2 = lin(ks[2], ks[3], fc1_dims, fc2_dims)
    wmu, bmu = lin(ks[4], ks[5], fc2_dims, action_dim)

    return {
        "w1": w1, "b1": b1,
        "g1": jnp.ones((1, fc1_dims), jnp.float32),
        "be1": jnp.zeros((1, fc1_dims), jnp.float32),
        "w2": w2, "b2": b2,
        "g2": jnp.ones((1, fc2_dims), jnp.float32),
        "be2": jnp.zeros((1, fc2_dims), jnp.float32),
        "wmu": wmu, "bmu": bmu,
    }


def _layernorm_ref(h, gamma, beta):
    mean = jnp.mean(h, axis=-1, keepdims=True)
    var = jnp.mean((h - mean) ** 2, axis=-1, keepdims=True)
    return (h - mean) * jax.lax.rsqrt(var + LN_EPS) * gamma + beta


def actor_forward_ref(state, p):
    """Plain-JAX f32 reference (standard two-pass LayerNorm)."""
    h = state @ p["w1"] + p["b1"]
    h = jnp.maximum(_layernorm_ref(h, p["g1"], p["be1"]), 0.0)
    h = h @ p["w2"] + p["b2"]
    h = jnp.maximum(_layernorm_ref(h, p["g2"], p["be2"]), 0.0)
    return h @ p["wmu"] + p["bmu"]


if __name__ == "__main__":
    # Small shapes consistent with the module: input_dims=(8,), fc1=32, fc2=32, action_dims=(4,)
    B, D_IN, FC1, FC2, A = 4, 8, 32, 32, 4

    key = jax.random.PRNGKey(0)
    k_state, k_params = jax.random.split(key)

    state = jax.random.normal(k_state, (B, D_IN), jnp.float32)
    params = init_params(k_params, D_IN, FC1, FC2, A)

    ref = actor_forward_ref(state, params)

    # f32-weight path: tight check of kernel structure (fused LN, padding, batch tiling).
    prep32, meta32 = prepare_params(params, param_dtype=jnp.float32)
    out_f32 = jax.block_until_ready(actor_forward(state, prep32, meta32))
    assert out_f32.shape == (B, A)
    assert jnp.allclose(out_f32, ref, atol=1e-4, rtol=1e-4), "f32 kernel mismatch vs reference"

    # bf16-weight path (default; HBM-bandwidth / MXU-rate optimized): looser tolerance.
    prep16, meta16 = prepare_params(params)      # bf16 weights
    out_bf16 = jax.block_until_ready(actor_forward(state, prep16, meta16))
    assert out_bf16.shape == (B, A)
    assert jnp.allclose(out_bf16, ref, atol=5e-2, rtol=5e-2), "bf16 kernel mismatch vs reference"

    print("KERNEL_OK")
</pallas_src>

<mosaic_0001>
module attributes {stable_mosaic.version = 11 : i64} {
  func.func @actor_kernel(%arg0: i32, %arg1: memref<16x8xf32, #tpu.memory_space<vmem>>, %arg2: memref<8x128xf32, #tpu.memory_space<vmem>>, %arg3: memref<8x128xf32, #tpu.memory_space<vmem>>, %arg4: memref<128x128xf32, #tpu.memory_space<vmem>>, %arg5: memref<8x128xf32, #tpu.memory_space<vmem>>, %arg6: memref<128x128xf32, #tpu.memory_space<vmem>>, %arg7: memref<8x128xf32, #tpu.memory_space<vmem>>, %arg8: memref<16x128xf32, #tpu.memory_space<vmem>>) attributes {dimension_semantics = [#tpu.dimension_semantics<parallel>], iteration_bounds = array<i64: 1>, scalar_prefetch = 0 : i64, scratch_operands = 0 : i64, tpu.core_type = #tpu.core_type<tc>, window_params = [{transform_indices = @transform_0, window_bounds = array<i64: 16, 8>}, {pipeline_mode = #tpu.pipeline_mode<synchronous>, transform_indices = @transform_1, window_bounds = array<i64: 8, 128>}, {pipeline_mode = #tpu.pipeline_mode<synchronous>, transform_indices = @transform_2, window_bounds = array<i64: 8, 128>}, {pipeline_mode = #tpu.pipeline_mode<synchronous>, transform_indices = @transform_3, window_bounds = array<i64: 128, 128>}, {pipeline_mode = #tpu.pipeline_mode<synchronous>, transform_indices = @transform_4, window_bounds = array<i64: 8, 128>}, {pipeline_mode = #tpu.pipeline_mode<synchronous>, transform_indices = @transform_5, window_bounds = array<i64: 128, 128>}, {pipeline_mode = #tpu.pipeline_mode<synchronous>, transform_indices = @transform_6, window_bounds = array<i64: 8, 128>}, {transform_indices = @transform_7, window_bounds = array<i64: 16, 128>}]} {
    %c0 = arith.constant 0 : index
    %c0_0 = arith.constant 0 : index
    %0 = vector.load %arg3[%c0, %c0_0] : memref<8x128xf32, #tpu.memory_space<vmem>>, vector<8x128xf32>
    %c0_1 = arith.constant 0 : index
    %c0_2 = arith.constant 0 : index
    %1 = vector.load %arg5[%c0_1, %c0_2] : memref<8x128xf32, #tpu.memory_space<vmem>>, vector<8x128xf32>
    %c0_3 = arith.constant 0 : index
    %c0_4 = arith.constant 0 : index
    %2 = vector.load %arg7[%c0_3, %c0_4] : memref<8x128xf32, #tpu.memory_space<vmem>>, vector<8x128xf32>
    %c0_5 = arith.constant 0 : index
    %c0_6 = arith.constant 0 : index
    %3 = vector.load %arg1[%c0_5, %c0_6] : memref<16x8xf32, #tpu.memory_space<vmem>>, vector<16x8xf32>
    %c0_7 = arith.constant 0 : index
    %c0_8 = arith.constant 0 : index
    %4 = vector.load %arg2[%c0_7, %c0_8] : memref<8x128xf32, #tpu.memory_space<vmem>>, vector<8x128xf32>
    %cst = arith.constant dense<0.000000e+00> : vector<16x128xf32>
    %5 = tpu.matmul %3, %4, %cst {dimension_numbers = #tpu.dot_dimension_numbers<[1], [0], [0], [1], [0, 0, 1, 1], [], []>} : vector<16x8xf32>, vector<8x128xf32>, vector<16x128xf32> -> vector<16x128xf32>
    %6 = vector.extract_strided_slice %0 {offsets = [0, 0], sizes = [1, 128], strides = [1, 1]} : vector<8x128xf32> to vector<1x128xf32>
    %7 = vector.broadcast %6 : vector<1x128xf32> to vector<16x128xf32>
    %8 = arith.addf %5, %7 : vector<16x128xf32>
    %9 = vector.extract_strided_slice %0 {offsets = [1, 0], sizes = [1, 128], strides = [1, 1]} : vector<8x128xf32> to vector<1x128xf32>
    %10 = vector.extract_strided_slice %0 {offsets = [2, 0], sizes = [1, 128], strides = [1, 1]} : vector<8x128xf32> to vector<1x128xf32>
    %cst_9 = arith.constant dense<0.000000e+00> : vector<16xf32>
    %11 = vector.multi_reduction <add>, %8, %cst_9 [1] : vector<16x128xf32> to vector<16xf32>
    %12 = vector.shape_cast %11 : vector<16xf32> to vector<16x1xf32>
    %cst_10 = arith.constant 3.125000e-02 : f32
    %13 = vector.broadcast %cst_10 : f32 to vector<16x1xf32>
    %14 = arith.mulf %12, %13 : vector<16x1xf32>
    %15 = vector.broadcast %14 : vector<16x1xf32> to vector<16x128xf32>
    %16 = arith.subf %8, %15 : vector<16x128xf32>
    %17 = arith.mulf %16, %16 : vector<16x128xf32>
    %cst_11 = arith.constant dense<0.000000e+00> : vector<16xf32>
    %18 = vector.multi_reduction <add>, %17, %cst_11 [1] : vector<16x128xf32> to vector<16xf32>
    %19 = vector.shape_cast %18 : vector<16xf32> to vector<16x1xf32>
    %cst_12 = arith.constant 9.600000e+01 : f32
    %20 = vector.broadcast %cst_12 : f32 to vector<16x1xf32>
    %21 = arith.mulf %20, %14 : vector<16x1xf32>
    %22 = arith.mulf %21, %14 : vector<16x1xf32>
    %23 = arith.subf %19, %22 : vector<16x1xf32>
    %cst_13 = arith.constant 3.125000e-02 : f32
    %24 = vector.broadcast %cst_13 : f32 to vector<16x1xf32>
    %25 = arith.mulf %23, %24 : vector<16x1xf32>
    %cst_14 = arith.constant 0.000000e+00 : f32
    %26 = vector.broadcast %cst_14 : f32 to vector<16x1xf32>
    %27 = arith.maximumf %25, %26 : vector<16x1xf32>
    %cst_15 = arith.constant 9.99999974E-6 : f32
    %28 = vector.broadcast %cst_15 : f32 to vector<16x1xf32>
    %29 = arith.addf %27, %28 : vector<16x1xf32>
    %30 = math.rsqrt %29 : vector<16x1xf32>
    %31 = vector.broadcast %9 : vector<1x128xf32> to vector<16x128xf32>
    %32 = vector.broadcast %30 : vector<16x1xf32> to vector<16x128xf32>
    %33 = arith.mulf %31, %32 : vector<16x128xf32>
    %34 = arith.mulf %16, %33 : vector<16x128xf32>
    %35 = vector.broadcast %10 : vector<1x128xf32> to vector<16x128xf32>
    %36 = arith.addf %34, %35 : vector<16x128xf32>
    %cst_16 = arith.constant 0.000000e+00 : f32
    %37 = vector.broadcast %cst_16 : f32 to vector<16x128xf32>
    %38 = arith.maximumf %36, %37 : vector<16x128xf32>
    %c0_17 = arith.constant 0 : index
    %c0_18 = arith.constant 0 : index
    %39 = vector.load %arg4[%c0_17, %c0_18] : memref<128x128xf32, #tpu.memory_space<vmem>>, vector<128x128xf32>
    %cst_19 = arith.constant dense<0.000000e+00> : vector<16x128xf32>
    %40 = tpu.matmul %38, %39, %cst_19 {dimension_numbers = #tpu.dot_dimension_numbers<[1], [0], [0], [1], [0, 0, 1, 1], [], []>} : vector<16x128xf32>, vector<128x128xf32>, vector<16x128xf32> -> vector<16x128xf32>
    %41 = vector.extract_strided_slice %1 {offsets = [0, 0], sizes = [1, 128], strides = [1, 1]} : vector<8x128xf32> to vector<1x128xf32>
    %42 = vector.broadcast %41 : vector<1x128xf32> to vector<16x128xf32>
    %43 = arith.addf %40, %42 : vector<16x128xf32>
    %44 = vector.extract_strided_slice %1 {offsets = [1, 0], sizes = [1, 128], strides = [1, 1]} : vector<8x128xf32> to vector<1x128xf32>
    %45 = vector.extract_strided_slice %1 {offsets = [2, 0], sizes = [1, 128], strides = [1, 1]} : vector<8x128xf32> to vector<1x128xf32>
    %cst_20 = arith.constant dense<0.000000e+00> : vector<16xf32>
    %46 = vector.multi_reduction <add>, %43, %cst_20 [1] : vector<16x128xf32> to vector<16xf32>
    %47 = vector.shape_cast %46 : vector<16xf32> to vector<16x1xf32>
    %cst_21 = arith.constant 3.125000e-02 : f32
    %48 = vector.broadcast %cst_21 : f32 to vector<16x1xf32>
    %49 = arith.mulf %47, %48 : vector<16x1xf32>
    %50 = vector.broadcast %49 : vector<16x1xf32> to vector<16x128xf32>
    %51 = arith.subf %43, %50 : vector<16x128xf32>
    %52 = arith.mulf %51, %51 : vector<16x128xf32>
    %cst_22 = arith.constant dense<0.000000e+00> : vector<16xf32>
    %53 = vector.multi_reduction <add>, %52, %cst_22 [1] : vector<16x128xf32> to vector<16xf32>
    %54 = vector.shape_cast %53 : vector<16xf32> to vector<16x1xf32>
    %cst_23 = arith.constant 9.600000e+01 : f32
    %55 = vector.broadcast %cst_23 : f32 to vector<16x1xf32>
    %56 = arith.mulf %55, %49 : vector<16x1xf32>
    %57 = arith.mulf %56, %49 : vector<16x1xf32>
    %58 = arith.subf %54, %57 : vector<16x1xf32>
    %cst_24 = arith.constant 3.125000e-02 : f32
    %59 = vector.broadcast %cst_24 : f32 to vector<16x1xf32>
    %60 = arith.mulf %58, %59 : vector<16x1xf32>
    %cst_25 = arith.constant 0.000000e+00 : f32
    %61 = vector.broadcast %cst_25 : f32 to vector<16x1xf32>
    %62 = arith.maximumf %60, %61 : vector<16x1xf32>
    %cst_26 = arith.constant 9.99999974E-6 : f32
    %63 = vector.broadcast %cst_26 : f32 to vector<16x1xf32>
    %64 = arith.addf %62, %63 : vector<16x1xf32>
    %65 = math.rsqrt %64 : vector<16x1xf32>
    %66 = vector.broadcast %44 : vector<1x128xf32> to vector<16x128xf32>
    %67 = vector.broadcast %65 : vector<16x1xf32> to vector<16x128xf32>
    %68 = arith.mulf %66, %67 : vector<16x128xf32>
    %69 = arith.mulf %51, %68 : vector<16x128xf32>
    %70 = vector.broadcast %45 : vector<1x128xf32> to vector<16x128xf32>
    %71 = arith.addf %69, %70 : vector<16x128xf32>
    %cst_27 = arith.constant 0.000000e+00 : f32
    %72 = vector.broadcast %cst_27 : f32 to vector<16x128xf32>
    %73 = arith.maximumf %71, %72 : vector<16x128xf32>
    %c0_28 = arith.constant 0 : index
    %c0_29 = arith.constant 0 : index
    %74 = vector.load %arg6[%c0_28, %c0_29] : memref<128x128xf32, #tpu.memory_space<vmem>>, vector<128x128xf32>
    %cst_30 = arith.constant dense<0.000000e+00> : vector<16x128xf32>
    %75 = tpu.matmul %73, %74, %cst_30 {dimension_numbers = #tpu.dot_dimension_numbers<[1], [0], [0], [1], [0, 0, 1, 1], [], []>} : vector<16x128xf32>, vector<128x128xf32>, vector<16x128xf32> -> vector<16x128xf32>
    %76 = vector.extract_strided_slice %2 {offsets = [0, 0], sizes = [1, 128], strides = [1, 1]} : vector<8x128xf32> to vector<1x128xf32>
    %77 = vector.broadcast %76 : vector<1x128xf32> to vector<16x128xf32>
    %78 = arith.addf %75, %77 : vector<16x128xf32>
    %c0_31 = arith.constant 0 : index
    %c0_32 = arith.constant 0 : index
    %79 = vector.load %arg8[%c0_31, %c0_32] : memref<16x128xf32, #tpu.memory_space<vmem>>, vector<16x128xf32>
    tpu.vector_store %arg8[%c0_31, %c0_32], %78 {strides = array<i32>} : memref<16x128xf32, #tpu.memory_space<vmem>>, vector<16x128xf32>,
    return
  }
  func.func @transform_0(%arg0: i32) -> (i32, i32) {
    %c0_i32 = arith.constant 0 : i32
    %c0_i32_0 = arith.constant 0 : i32
    return %arg0, %c0_i32 : i32, i32
  }
  func.func @transform_1(%arg0: i32) -> (i32, i32) {
    %c0_i32 = arith.constant 0 : i32
    %c0_i32_0 = arith.constant 0 : i32
    %c0_i32_1 = arith.constant 0 : i32
    return %c0_i32, %c0_i32_0 : i32, i32
  }
  func.func @transform_2(%arg0: i32) -> (i32, i32) {
    %c0_i32 = arith.constant 0 : i32
    %c0_i32_0 = arith.constant 0 : i32
    %c0_i32_1 = arith.constant 0 : i32
    return %c0_i32, %c0_i32_0 : i32, i32
  }
  func.func @transform_3(%arg0: i32) -> (i32, i32) {
    %c0_i32 = arith.constant 0 : i32
    %c0_i32_0 = arith.constant 0 : i32
    %c0_i32_1 = arith.constant 0 : i32
    return %c0_i32, %c0_i32_0 : i32, i32
  }
  func.func @transform_4(%arg0: i32) -> (i32, i32) {
    %c0_i32 = arith.constant 0 : i32
    %c0_i32_0 = arith.constant 0 : i32
    %c0_i32_1 = arith.constant 0 : i32
    return %c0_i32, %c0_i32_0 : i32, i32
  }
  func.func @transform_5(%arg0: i32) -> (i32, i32) {
    %c0_i32 = arith.constant 0 : i32
    %c0_i32_0 = arith.constant 0 : i32
    %c0_i32_1 = arith.constant 0 : i32
    return %c0_i32, %c0_i32_0 : i32, i32
  }
  func.func @transform_6(%arg0: i32) -> (i32, i32) {
    %c0_i32 = arith.constant 0 : i32
    %c0_i32_0 = arith.constant 0 : i32
    %c0_i32_1 = arith.constant 0 : i32
    return %c0_i32, %c0_i32_0 : i32, i32
  }
  func.func @transform_7(%arg0: i32) -> (i32, i32) {
    %c0_i32 = arith.constant 0 : i32
    %c0_i32_0 = arith.constant 0 : i32
    return %arg0, %c0_i32 : i32, i32
  }
}

module attributes {stable_mosaic.version = 11 : i64} {
  func.func @actor_kernel(%arg0: i32, %arg1: memref<16x8xf32, #tpu.memory_space<vmem>>, %arg2: memref<8x128xf32, #tpu.memory_space<vmem>>, %arg3: memref<8x128xf32, #tpu.memory_space<vmem>>, %arg4: memref<128x128xf32, #tpu.memory_space<vmem>>, %arg5: memref<8x128xf32, #tpu.memory_space<vmem>>, %arg6: memref<128x128xf32, #tpu.memory_space<vmem>>, %arg7: memref<8x128xf32, #tpu.memory_space<vmem>>, %arg8: memref<16x128xf32, #tpu.memory_space<vmem>>) attributes {dimension_semantics = [#tpu.dimension_semantics<parallel>], iteration_bounds = array<i64: 1>, scalar_prefetch = 0 : i64, scratch_operands = 0 : i64, tpu.core_type = #tpu.core_type<tc>, window_params = [{transform_indices = @transform_0, window_bounds = array<i64: 16, 8>}, {pipeline_mode = #tpu.pipeline_mode<synchronous>, transform_indices = @transform_1, window_bounds = array<i64: 8, 128>}, {pipeline_mode = #tpu.pipeline_mode<synchronous>, transform_indices = @transform_2, window_bounds = array<i64: 8, 128>}, {pipeline_mode = #tpu.pipeline_mode<synchronous>, transform_indices = @transform_3, window_bounds = array<i64: 128, 128>}, {pipeline_mode = #tpu.pipeline_mode<synchronous>, transform_indices = @transform_4, window_bounds = array<i64: 8, 128>}, {pipeline_mode = #tpu.pipeline_mode<synchronous>, transform_indices = @transform_5, window_bounds = array<i64: 128, 128>}, {pipeline_mode = #tpu.pipeline_mode<synchronous>, transform_indices = @transform_6, window_bounds = array<i64: 8, 128>}, {transform_indices = @transform_7, window_bounds = array<i64: 16, 128>}]} {
    %c0 = arith.constant 0 : index
    %c0_0 = arith.constant 0 : index
    %0 = vector.load %arg3[%c0, %c0_0] : memref<8x128xf32, #tpu.memory_space<vmem>>, vector<8x128xf32>
    %c0_1 = arith.constant 0 : index
    %c0_2 = arith.constant 0 : index
    %1 = vector.load %arg5[%c0_1, %c0_2] : memref<8x128xf32, #tpu.memory_space<vmem>>, vector<8x128xf32>
    %c0_3 = arith.constant 0 : index
    %c0_4 = arith.constant 0 : index
    %2 = vector.load %arg7[%c0_3, %c0_4] : memref<8x128xf32, #tpu.memory_space<vmem>>, vector<8x128xf32>
    %c0_5 = arith.constant 0 : index
    %c0_6 = arith.constant 0 : index
    %3 = vector.load %arg1[%c0_5, %c0_6] : memref<16x8xf32, #tpu.memory_space<vmem>>, vector<16x8xf32>
    %c0_7 = arith.constant 0 : index
    %c0_8 = arith.constant 0 : index
    %4 = vector.load %arg2[%c0_7, %c0_8] : memref<8x128xf32, #tpu.memory_space<vmem>>, vector<8x128xf32>
    %cst = arith.constant dense<0.000000e+00> : vector<16x128xf32>
    %5 = tpu.matmul %3, %4, %cst {dimension_numbers = #tpu.dot_dimension_numbers<[1], [0], [0], [1], [0, 0, 1, 1], [], []>} : vector<16x8xf32>, vector<8x128xf32>, vector<16x128xf32> -> vector<16x128xf32>
    %6 = vector.extract_strided_slice %0 {offsets = [0, 0], sizes = [1, 128], strides = [1, 1]} : vector<8x128xf32> to vector<1x128xf32>
    %7 = vector.broadcast %6 : vector<1x128xf32> to vector<16x128xf32>
    %8 = arith.addf %5, %7 : vector<16x128xf32>
    %9 = vector.extract_strided_slice %0 {offsets = [1, 0], sizes = [1, 128], strides = [1, 1]} : vector<8x128xf32> to vector<1x128xf32>
    %10 = vector.extract_strided_slice %0 {offsets = [2, 0], sizes = [1, 128], strides = [1, 1]} : vector<8x128xf32> to vector<1x128xf32>
    %cst_9 = arith.constant dense<0.000000e+00> : vector<16xf32>
    %11 = vector.multi_reduction <add>, %8, %cst_9 [1] : vector<16x128xf32> to vector<16xf32>
    %12 = vector.shape_cast %11 : vector<16xf32> to vector<16x1xf32>
    %cst_10 = arith.constant 3.125000e-02 : f32
    %13 = vector.broadcast %cst_10 : f32 to vector<16x1xf32>
    %14 = arith.mulf %12, %13 : vector<16x1xf32>
    %15 = vector.broadcast %14 : vector<16x1xf32> to vector<16x128xf32>
    %16 = arith.subf %8, %15 : vector<16x128xf32>
    %17 = arith.mulf %16, %16 : vector<16x128xf32>
    %cst_11 = arith.constant dense<0.000000e+00> : vector<16xf32>
    %18 = vector.multi_reduction <add>, %17, %cst_11 [1] : vector<16x128xf32> to vector<16xf32>
    %19 = vector.shape_cast %18 : vector<16xf32> to vector<16x1xf32>
    %cst_12 = arith.constant 9.600000e+01 : f32
    %20 = vector.broadcast %cst_12 : f32 to vector<16x1xf32>
    %21 = arith.mulf %20, %14 : vector<16x1xf32>
    %22 = arith.mulf %21, %14 : vector<16x1xf32>
    %23 = arith.subf %19, %22 : vector<16x1xf32>
    %cst_13 = arith.constant 3.125000e-02 : f32
    %24 = vector.broadcast %cst_13 : f32 to vector<16x1xf32>
    %25 = arith.mulf %23, %24 : vector<16x1xf32>
    %cst_14 = arith.constant 0.000000e+00 : f32
    %26 = vector.broadcast %cst_14 : f32 to vector<16x1xf32>
    %27 = arith.maximumf %25, %26 : vector<16x1xf32>
    %cst_15 = arith.constant 9.99999974E-6 : f32
    %28 = vector.broadcast %cst_15 : f32 to vector<16x1xf32>
    %29 = arith.addf %27, %28 : vector<16x1xf32>
    %30 = math.rsqrt %29 : vector<16x1xf32>
    %31 = vector.broadcast %9 : vector<1x128xf32> to vector<16x128xf32>
    %32 = vector.broadcast %30 : vector<16x1xf32> to vector<16x128xf32>
    %33 = arith.mulf %31, %32 : vector<16x128xf32>
    %34 = arith.mulf %16, %33 : vector<16x128xf32>
    %35 = vector.broadcast %10 : vector<1x128xf32> to vector<16x128xf32>
    %36 = arith.addf %34, %35 : vector<16x128xf32>
    %cst_16 = arith.constant 0.000000e+00 : f32
    %37 = vector.broadcast %cst_16 : f32 to vector<16x128xf32>
    %38 = arith.maximumf %36, %37 : vector<16x128xf32>
    %c0_17 = arith.constant 0 : index
    %c0_18 = arith.constant 0 : index
    %39 = vector.load %arg4[%c0_17, %c0_18] : memref<128x128xf32, #tpu.memory_space<vmem>>, vector<128x128xf32>
    %cst_19 = arith.constant dense<0.000000e+00> : vector<16x128xf32>
    %40 = tpu.matmul %38, %39, %cst_19 {dimension_numbers = #tpu.dot_dimension_numbers<[1], [0], [0], [1], [0, 0, 1, 1], [], []>} : vector<16x128xf32>, vector<128x128xf32>, vector<16x128xf32> -> vector<16x128xf32>
    %41 = vector.extract_strided_slice %1 {offsets = [0, 0], sizes = [1, 128], strides = [1, 1]} : vector<8x128xf32> to vector<1x128xf32>
    %42 = vector.broadcast %41 : vector<1x128xf32> to vector<16x128xf32>
    %43 = arith.addf %40, %42 : vector<16x128xf32>
    %44 = vector.extract_strided_slice %1 {offsets = [1, 0], sizes = [1, 128], strides = [1, 1]} : vector<8x128xf32> to vector<1x128xf32>
    %45 = vector.extract_strided_slice %1 {offsets = [2, 0], sizes = [1, 128], strides = [1, 1]} : vector<8x128xf32> to vector<1x128xf32>
    %cst_20 = arith.constant dense<0.000000e+00> : vector<16xf32>
    %46 = vector.multi_reduction <add>, %43, %cst_20 [1] : vector<16x128xf32> to vector<16xf32>
    %47 = vector.shape_cast %46 : vector<16xf32> to vector<16x1xf32>
    %cst_21 = arith.constant 3.125000e-02 : f32
    %48 = vector.broadcast %cst_21 : f32 to vector<16x1xf32>
    %49 = arith.mulf %47, %48 : vector<16x1xf32>
    %50 = vector.broadcast %49 : vector<16x1xf32> to vector<16x128xf32>
    %51 = arith.subf %43, %50 : vector<16x128xf32>
    %52 = arith.mulf %51, %51 : vector<16x128xf32>
    %cst_22 = arith.constant dense<0.000000e+00> : vector<16xf32>
    %53 = vector.multi_reduction <add>, %52, %cst_22 [1] : vector<16x128xf32> to vector<16xf32>
    %54 = vector.shape_cast %53 : vector<16xf32> to vector<16x1xf32>
    %cst_23 = arith.constant 9.600000e+01 : f32
    %55 = vector.broadcast %cst_23 : f32 to vector<16x1xf32>
    %56 = arith.mulf %55, %49 : vector<16x1xf32>
    %57 = arith.mulf %56, %49 : vector<16x1xf32>
    %58 = arith.subf %54, %57 : vector<16x1xf32>
    %cst_24 = arith.constant 3.125000e-02 : f32
    %59 = vector.broadcast %cst_24 : f32 to vector<16x1xf32>
    %60 = arith.mulf %58, %59 : vector<16x1xf32>
    %cst_25 = arith.constant 0.000000e+00 : f32
    %61 = vector.broadcast %cst_25 : f32 to vector<16x1xf32>
    %62 = arith.maximumf %60, %61 : vector<16x1xf32>
    %cst_26 = arith.constant 9.99999974E-6 : f32
    %63 = vector.broadcast %cst_26 : f32 to vector<16x1xf32>
    %64 = arith.addf %62, %63 : vector<16x1xf32>
    %65 = math.rsqrt %64 : vector<16x1xf32>
    %66 = vector.broadcast %44 : vector<1x128xf32> to vector<16x128xf32>
    %67 = vector.broadcast %65 : vector<16x1xf32> to vector<16x128xf32>
    %68 = arith.mulf %66, %67 : vector<16x128xf32>
    %69 = arith.mulf %51, %68 : vector<16x128xf32>
    %70 = vector.broadcast %45 : vector<1x128xf32> to vector<16x128xf32>
    %71 = arith.addf %69, %70 : vector<16x128xf32>
    %cst_27 = arith.constant 0.000000e+00 : f32
    %72 = vector.broadcast %cst_27 : f32 to vector<16x128xf32>
    %73 = arith.maximumf %71, %72 : vector<16x128xf32>
    %c0_28 = arith.constant 0 : index
    %c0_29 = arith.constant 0 : index
    %74 = vector.load %arg6[%c0_28, %c0_29] : memref<128x128xf32, #tpu.memory_space<vmem>>, vector<128x128xf32>
    %cst_30 = arith.constant dense<0.000000e+00> : vector<16x128xf32>
    %75 = tpu.matmul %73, %74, %cst_30 {dimension_numbers = #tpu.dot_dimension_numbers<[1], [0], [0], [1], [0, 0, 1, 1], [], []>} : vector<16x128xf32>, vector<128x128xf32>, vector<16x128xf32> -> vector<16x128xf32>
    %76 = vector.extract_strided_slice %2 {offsets = [0, 0], sizes = [1, 128], strides = [1, 1]} : vector<8x128xf32> to vector<1x128xf32>
    %77 = vector.broadcast %76 : vector<1x128xf32> to vector<16x128xf32>
    %78 = arith.addf %75, %77 : vector<16x128xf32>
    %c0_31 = arith.constant 0 : index
    %c0_32 = arith.constant 0 : index
    %79 = vector.load %arg8[%c0_31, %c0_32] : memref<16x128xf32, #tpu.memory_space<vmem>>, vector<16x128xf32>
    tpu.vector_store %arg8[%c0_31, %c0_32], %78 {strides = array<i32>} : memref<16x128xf32, #tpu.memory_space<vmem>>, vector<16x128xf32>,
    return
  }
  func.func @transform_0(%arg0: i32) -> (i32, i32) {
    %c0_i32 = arith.constant 0 : i32
    %c0_i32_0 = arith.constant 0 : i32
    return %arg0, %c0_i32 : i32, i32
  }
  func.func @transform_1(%arg0: i32) -> (i32, i32) {
    %c0_i32 = arith.constant 0 : i32
    %c0_i32_0 = arith.constant 0 : i32
    %c0_i32_1 = arith.constant 0 : i32
    return %c0_i32, %c0_i32_0 : i32, i32
  }
  func.func @transform_2(%arg0: i32) -> (i32, i32) {
    %c0_i32 = arith.constant 0 : i32
    %c0_i32_0 = arith.constant 0 : i32
    %c0_i32_1 = arith.constant 0 : i32
    return %c0_i32, %c0_i32_0 : i32, i32
  }
  func.func @transform_3(%arg0: i32) -> (i32, i32) {
    %c0_i32 = arith.constant 0 : i32
    %c0_i32_0 = arith.constant 0 : i32
    %c0_i32_1 = arith.constant 0 : i32
    return %c0_i32, %c0_i32_0 : i32, i32
  }
  func.func @transform_4(%arg0: i32) -> (i32, i32) {
    %c0_i32 = arith.constant 0 : i32
    %c0_i32_0 = arith.constant 0 : i32
    %c0_i32_1 = arith.constant 0 : i32
    return %c0_i32, %c0_i32_0 : i32, i32
  }
  func.func @transform_5(%arg0: i32) -> (i32, i32) {
    %c0_i32 = arith.constant 0 : i32
    %c0_i32_0 = arith.constant 0 : i32
    %c0_i32_1 = arith.constant 0 : i32
    return %c0_i32, %c0_i32_0 : i32, i32
  }
  func.func @transform_6(%arg0: i32) -> (i32, i32) {
    %c0_i32 = arith.constant 0 : i32
    %c0_i32_0 = arith.constant 0 : i32
    %c0_i32_1 = arith.constant 0 : i32
    return %c0_i32, %c0_i32_0 : i32, i32
  }
  func.func @transform_7(%arg0: i32) -> (i32, i32) {
    %c0_i32 = arith.constant 0 : i32
    %c0_i32_0 = arith.constant 0 : i32
    return %arg0, %c0_i32 : i32, i32
  }
}

</mosaic_0001>

<llo_original>
// kernel: tpu_custom_call.1
$region0: #{tpu_custom_call.1}
  #allocation0 [shape = 'u32[]', space=smem, size = 0x4, offset = 0x4, fixed_abs, tag = 'smem constant byte address 0x4 - core index']
  #allocation1 [shape = 'u32[144,128]{1,0:T(1,128)}', space=vmem, size = 0x12000, scoped, tag = 'internal scratch']
  %s0 = inlined_call_operand.vmem [shape: f32[16,8], index: 0, kind: input, shape index: {}]
  %s1 = inlined_call_operand.vmem [shape: f32[8,128], index: 1, kind: input, shape index: {}]
  %s2 = inlined_call_operand.vmem [shape: f32[8,128], index: 2, kind: input, shape index: {}]
  %s3 = inlined_call_operand.hbm [shape: f32[128,128], index: 3, kind: input, shape index: {}]
  %s4 = inlined_call_operand.vmem [shape: f32[8,128], index: 4, kind: input, shape index: {}]
  %s5 = inlined_call_operand.hbm [shape: f32[128,128], index: 5, kind: input, shape index: {}]
  %s6 = inlined_call_operand.vmem [shape: f32[8,128], index: 6, kind: input, shape index: {}]
  %s7 = inlined_call_operand.hbm [shape: f32[16,128], index: 7, kind: output, shape index: {}]
  %s8 = sld [smem:[#allocation0]]
  $region46: #{tpu_custom_call.1} parent=0
    _
  %s10 = ssub.s32 1, %s8
  %s11 = scalar_select 0, %s10, %s8
  $region1: #{tpu_custom_call.1} parent=0
    #allocation2 [shape = 'u8[65536]{0}', space=vmem, size = 0x10000, scoped, tag = 'input window, operand 3, single buffered']
    #allocation3 [shape = 's32[1]{0}', space=sflag, size = 0x4, scoped, tag = 'scoped memory for tpu_custom_call.1']
    #allocation4 [shape = 's32[1]{0}', space=sflag, size = 0x4, scoped, tag = 'scoped memory for tpu_custom_call.1']
    #allocation5 [shape = 'u8[65536]{0}', space=vmem, size = 0x10000, scoped, tag = 'input window, operand 5, single buffered']
    #allocation6 [shape = 's32[1]{0}', space=sflag, size = 0x4, scoped, tag = 'scoped memory for tpu_custom_call.1']
    #allocation7 [shape = 'u8[8192]{0}', space=vmem, size = 0x2000, scoped, tag = 'output window, operand 0, single buffered']
    %12 = vsyncpa [#allocation3], 0
    %13 = vsyncpa [#allocation6], 0
    %14 = vsyncpa [#allocation4], 0
    // Predicated region
    $region2: #{tpu_custom_call.1} parent=1 // pred_check
      _
    $region3: #{tpu_custom_call.1} parent=1 // pred_check_branch
      %16 = sbr.rel (0) target = $region5
    $region4: #{tpu_custom_call.1} parent=1 // pred_region
      _
    $region5: #{tpu_custom_call.1} parent=1 // pred_fallthru
      _
    // Predicated region
    $region6: #{tpu_custom_call.1} parent=1 // pred_check
      _
    $region7: #{tpu_custom_call.1} parent=1 // pred_check_branch
      %18 = sbr.rel (0) target = $region9
    $region8: #{tpu_custom_call.1} parent=1 // pred_region
      _
    $region9: #{tpu_custom_call.1} parent=1 // pred_fallthru
      _
    // Predicated region
    $region10: #{tpu_custom_call.1} parent=1 // pred_check
      _
    $region11: #{tpu_custom_call.1} parent=1 // pred_check_branch
      %20 = sbr.rel (0) target = $region13
    $region12: #{tpu_custom_call.1} parent=1 // pred_region
      _
    $region13: #{tpu_custom_call.1} parent=1 // pred_fallthru
      _
    // Predicated region
    $region14: #{tpu_custom_call.1} parent=1 // pred_check
      _
    $region15: #{tpu_custom_call.1} parent=1 // pred_check_branch
      %22 = sbr.rel (0) target = $region17
    $region16: #{tpu_custom_call.1} parent=1 // pred_region
      %s24 = ssub.s32 2048, 2048
      %25 = vsyncadd [#allocation3], %s24
      %s26 = sshll.u32 [#allocation2], 4
      %s27 = int_to_ptr.vmem [resolvable:$true] %s26
      %32 = dma.hbm_to_vmem [thread:$0]  %s3, 2048, %s27, [#allocation3], 128, 128, 8
    $region17: #{tpu_custom_call.1} parent=1 // pred_fallthru
      _
    // Predicated region
    $region18: #{tpu_custom_call.1} parent=1 // pred_check
      _
    $region19: #{tpu_custom_call.1} parent=1 // pred_check_branch
      %34 = sbr.rel (0) target = $region21
    $region20: #{tpu_custom_call.1} parent=1 // pred_region
      _
    $region21: #{tpu_custom_call.1} parent=1 // pred_fallthru
      _
    // Predicated region
    $region22: #{tpu_custom_call.1} parent=1 // pred_check
      _
    $region23: #{tpu_custom_call.1} parent=1 // pred_check_branch
      %36 = sbr.rel (0) target = $region25
    $region24: #{tpu_custom_call.1} parent=1 // pred_region
      %s38 = ssub.s32 2048, 2048
      %39 = vsyncadd [#allocation6], %s38
      %s40 = sshll.u32 [#allocation5], 4
      %s41 = int_to_ptr.vmem [resolvable:$true] %s40
      %46 = dma.hbm_to_vmem [thread:$0]  %s5, 2048, %s41, [#allocation6], 128, 128, 8
    $region25: #{tpu_custom_call.1} parent=1 // pred_fallthru
      _
    // Predicated region
    $region26: #{tpu_custom_call.1} parent=1 // pred_check
      _
    $region27: #{tpu_custom_call.1} parent=1 // pred_check_branch
      %48 = sbr.rel (0) target = $region29
    $region28: #{tpu_custom_call.1} parent=1 // pred_region
      _
    $region29: #{tpu_custom_call.1} parent=1 // pred_fallthru
      _
    // Predicated region
    $region30: #{tpu_custom_call.1} parent=1 // pred_check
      _
    $region31: #{tpu_custom_call.1} parent=1 // pred_check_branch
      %50 = sbr.rel (0) target = $region33
    $region32: #{tpu_custom_call.1} parent=1 // pred_region
      %51 = dma.done [#allocation3], 2048
    $region33: #{tpu_custom_call.1} parent=1 // pred_fallthru
      _
    // Predicated region
    $region34: #{tpu_custom_call.1} parent=1 // pred_check
      _
    $region35: #{tpu_custom_call.1} parent=1 // pred_check_branch
      %53 = sbr.rel (0) target = $region37
    $region36: #{tpu_custom_call.1} parent=1 // pred_region
      %54 = dma.done [#allocation6], 2048
    $region37: #{tpu_custom_call.1} parent=1 // pred_fallthru
      _
    %v55 = vld [vmem:[%s2] sm:$0xff]
    %v56 = vld [vmem:[%s4] sm:$0xff]
    %v57 = vld [vmem:[%s6] sm:$0xff]
    %v58 = vld [vmem:[%s0] sm:$0xff]
    %v59 = vld [vmem:[%s0 + $0x8] sm:$0xff]
    %v60 = vld [vmem:[%s1] sm:$0xff]
    %v61 = vlaneseq
    %v62 = vshrl.u32 %v61, 7
    %v63 = vsub.s32 0, %v62
    %v64 = vrot.slane %v55, %v63
    %vm65 = vcmask 64512
    %v67 = vsel %vm65, %v58, 0
    %v70 = vsel %vm65, %v59, 0
    %72 = vmatprep.subr.mxu0 0.0
    %73 = vmatpush1.msra.mxu0 %v60
    %74 = vmatprep.subr.mxu0 0.0
    %75 = vmatpush1.msra.mxu0 0.0
    %76 = vmatprep.subr.mxu0 0.0
    %77 = vmatpush1.msra.mxu0 0.0
    %78 = vmatprep.subr.mxu0 0.0
    %79 = vmatpush1.msra.mxu0 0.0
    %80 = vmatprep.subr.mxu0 0.0
    %81 = vmatpush1.msra.mxu0 0.0
    %82 = vmatprep.subr.mxu0 0.0
    %83 = vmatpush1.msra.mxu0 0.0
    %84 = vmatprep.subr.mxu0 0.0
    %85 = vmatpush1.msra.mxu0 0.0
    %86 = vmatprep.subr.mxu0 0.0
    %87 = vmatpush1.msra.mxu0 0.0
    %88 = vmatprep.subr.mxu0 0.0
    %89 = vmatpush1.msra.mxu0 0.0
    %90 = vmatprep.subr.mxu0 0.0
    %91 = vmatpush1.msra.mxu0 0.0
    %92 = vmatprep.subr.mxu0 0.0
    %93 = vmatpush1.msra.mxu0 0.0
    %94 = vmatprep.subr.mxu0 0.0
    %95 = vmatpush1.msra.mxu0 0.0
    %96 = vmatprep.subr.mxu0 0.0
    %97 = vmatpush1.msra.mxu0 0.0
    %98 = vmatprep.subr.mxu0 0.0
    %99 = vmatpush1.msra.mxu0 0.0
    %100 = vmatprep.subr.mxu0 0.0
    %101 = vmatpush1.msra.mxu0 0.0
    %102 = vmatprep.subr.mxu0 0.0
    %103 = vmatpush1.msra.mxu0 0.0
    %104 = vmatprep.subr.mxu0 0.0
    %105 = vmatpush1.msra.mxu0 0.0
    %106 = vmatprep.subr.mxu0 0.0
    %107 = vmatpush1.msra.mxu0 0.0
    %108 = vmatprep.subr.mxu0 0.0
    %109 = vmatpush1.msra.mxu0 0.0
    %110 = vmatprep.subr.mxu0 0.0
    %111 = vmatpush1.msra.mxu0 0.0
    %112 = vmatprep.subr.mxu0 0.0
    %113 = vmatpush1.msra.mxu0 0.0
    %114 = vmatprep.subr.mxu0 0.0
    %115 = vmatpush1.msra.mxu0 0.0
    %116 = vmatprep.subr.mxu0 0.0
    %117 = vmatpush1.msra.mxu0 0.0
    %118 = vmatprep.subr.mxu0 0.0
    %119 = vmatpush1.msra.mxu0 0.0
    %120 = vmatprep.subr.mxu0 0.0
    %121 = vmatpush1.msra.mxu0 0.0
    %122 = vmatprep.subr.mxu0 0.0
    %123 = vmatpush1.msra.mxu0 0.0
    %124 = vmatprep.subr.mxu0 0.0
    %125 = vmatpush1.msra.mxu0 0.0
    %126 = vmatprep.subr.mxu0 0.0
    %127 = vmatpush1.msra.mxu0 0.0
    %128 = vmatprep.subr.mxu0 0.0
    %129 = vmatpush1.msra.mxu0 0.0
    %130 = vmatprep.subr.mxu0 0.0
    %131 = vmatpush1.msra.mxu0 0.0
    %132 = vmatprep.subr.mxu0 0.0
    %133 = vmatpush1.msra.mxu0 0.0
    %134 = vmatprep.subr.mxu0 0.0
    %135 = vmatpush1.msra.mxu0 0.0
    %136 = vmatprep.mubr.f32.mxu0 0.0
    %137 = vmatmul.mubr.f32.gmra.mrb[0].mxu0 %v67
    %v138 = vpop.f32.mrb[0].mxu0
    %v139 = vadd.f32 %v64, %v138
    %v140 = vpop.f32.mrb[0].mxu0
    %141 = vmatprep.mubr.f32.mxu0 0.0
    %142 = vmatmul.mubr.f32.gmra.mrb[0].mxu0 %v70
    %v143 = vpop.f32.mrb[0].mxu0
    %v144 = vadd.f32 %v64, %v143
    %v145 = vpop.f32.mrb[0].mxu0
    %146 = vdwg.mxu0
    %147 = vadd.xlane.f32.xlu0 %v139
    %v148 = vpop.xlane.xlu0 %147
    %149 = vadd.xlane.f32.xlu0 %v144
    %v150 = vpop.xlane.xlu0 %149
    %v151 = vmul.f32 %v148, 0.03125
    %v152 = vmul.f32 %v150, 0.03125
    %v153 = vsub.f32 %v139, %v151
    %v154 = vsub.f32 %v144, %v152
    %v155 = vmul.f32 %v153, %v153
    %v156 = vmul.f32 %v154, %v154
    %157 = vadd.xlane.f32.xlu0 %v155
    %v158 = vpop.xlane.xlu0 %157
    %159 = vadd.xlane.f32.xlu0 %v156
    %v160 = vpop.xlane.xlu0 %159
    %v161 = vmul.f32 %v151, 96.0
    %v162 = vmul.f32 %v152, 96.0
    %v163 = vmul.f32 %v161, %v151
    %v164 = vmul.f32 %v162, %v152
    %v165 = vsub.f32 %v158, %v163
    %v166 = vsub.f32 %v160, %v164
    %v167 = vmul.f32 %v165, 0.03125
    %v168 = vmul.f32 %v166, 0.03125
    %v169 = vmax.f32 %v167, 0.0
    %v170 = vmax.f32 %v168, 0.0
    %v171 = vadd.f32 %v169, 1e-05
    %v172 = vadd.f32 %v170, 1e-05
    %v173 = vrsqrt.pop %v171
    %v174 = vrsqrt.pop %v172
    %v175 = vlaneseq
    %v176 = vshrl.u32 %v175, 7
    %v177 = vsub.s32 1, %v176
    %v178 = vrot.slane %v55, %v177
    %v179 = vmul.f32 %v178, %v173
    %v180 = vmul.f32 %v178, %v174
    %v181 = vmul.f32 %v153, %v179
    %v182 = vmul.f32 %v154, %v180
    %v183 = vlaneseq
    %v184 = vshrl.u32 %v183, 7
    %v185 = vsub.s32 2, %v184
    %v186 = vrot.slane %v55, %v185
    %v187 = vadd.f32 %v181, %v186
    %v188 = vadd.f32 %v182, %v186
    %v189 = vmax.f32 %v187, 0.0
    %v190 = vmax.f32 %v188, 0.0
    %v191 = vld [vmem:[#allocation2] sm:$0xff]
    %v192 = vld [vmem:[#allocation2 + $0x8] sm:$0xff]
    %v193 = vld [vmem:[#allocation2 + $0x10] sm:$0xff]
    %v194 = vld [vmem:[#allocation2 + $0x18] sm:$0xff]
    %v195 = vld [vmem:[#allocation2 + $0x20] sm:$0xff]
    %v196 = vld [vmem:[#allocation2 + $0x28] sm:$0xff]
    %v197 = vld [vmem:[#allocation2 + $0x30] sm:$0xff]
    %v198 = vld [vmem:[#allocation2 + $0x38] sm:$0xff]
    %v199 = vld [vmem:[#allocation2 + $0x40] sm:$0xff]
    %v200 = vld [vmem:[#allocation2 + $0x48] sm:$0xff]
    %v201 = vld [vmem:[#allocation2 + $0x50] sm:$0xff]
    %v202 = vld [vmem:[#allocation2 + $0x58] sm:$0xff]
    %v203 = vld [vmem:[#allocation2 + $0x60] sm:$0xff]
    %v204 = vld [vmem:[#allocation2 + $0x68] sm:$0xff]
    %v205 = vld [vmem:[#allocation2 + $0x70] sm:$0xff]
    %v206 = vld [vmem:[#allocation2 + $0x78] sm:$0xff]
    %v207 = vlaneseq
    %v208 = vshrl.u32 %v207, 7
    %v209 = vsub.s32 0, %v208
    %v210 = vrot.slane %v56, %v209
    %211 = vmatprep.subr.mxu0 0.0
    %212 = vmatpush1.msra.mxu0 %v191
    %213 = vmatprep.subr.mxu0 0.0
    %214 = vmatpush1.msra.mxu0 %v192
    %215 = vmatprep.subr.mxu0 0.0
    %216 = vmatpush1.msra.mxu0 %v193
    %217 = vmatprep.subr.mxu0 0.0
    %218 = vmatpush1.msra.mxu0 %v194
    %219 = vmatprep.subr.mxu0 0.0
    %220 = vmatpush1.msra.mxu0 %v195
    %221 = vmatprep.subr.mxu0 0.0
    %222 = vmatpush1.msra.mxu0 %v196
    %223 = vmatprep.subr.mxu0 0.0
    %224 = vmatpush1.msra.mxu0 %v197
    %225 = vmatprep.subr.mxu0 0.0
    %226 = vmatpush1.msra.mxu0 %v198
    %227 = vmatprep.subr.mxu0 0.0
    %228 = vmatpush1.msra.mxu0 %v199
    %229 = vmatprep.subr.mxu0 0.0
    %230 = vmatpush1.msra.mxu0 %v200
    %231 = vmatprep.subr.mxu0 0.0
    %232 = vmatpush1.msra.mxu0 %v201
    %233 = vmatprep.subr.mxu0 0.0
    %234 = vmatpush1.msra.mxu0 %v202
    %235 = vmatprep.subr.mxu0 0.0
    %236 = vmatpush1.msra.mxu0 %v203
    %237 = vmatprep.subr.mxu0 0.0
    %238 = vmatpush1.msra.mxu0 %v204
    %239 = vmatprep.subr.mxu0 0.0
    %240 = vmatpush1.msra.mxu0 %v205
    %241 = vmatprep.subr.mxu0 0.0
    %242 = vmatpush1.msra.mxu0 %v206
    %243 = vmatprep.subr.mxu0 0.0
    %244 = vmatpush1.msra.mxu0 0.0
    %245 = vmatprep.subr.mxu0 0.0
    %246 = vmatpush1.msra.mxu0 0.0
    %247 = vmatprep.subr.mxu0 0.0
    %248 = vmatpush1.msra.mxu0 0.0
    %249 = vmatprep.subr.mxu0 0.0
    %250 = vmatpush1.msra.mxu0 0.0
    %251 = vmatprep.subr.mxu0 0.0
    %252 = vmatpush1.msra.mxu0 0.0
    %253 = vmatprep.subr.mxu0 0.0
    %254 = vmatpush1.msra.mxu0 0.0
    %255 = vmatprep.subr.mxu0 0.0
    %256 = vmatpush1.msra.mxu0 0.0
    %257 = vmatprep.subr.mxu0 0.0
    %258 = vmatpush1.msra.mxu0 0.0
    %259 = vmatprep.subr.mxu0 0.0
    %260 = vmatpush1.msra.mxu0 0.0
    %261 = vmatprep.subr.mxu0 0.0
    %262 = vmatpush1.msra.mxu0 0.0
    %263 = vmatprep.subr.mxu0 0.0
    %264 = vmatpush1.msra.mxu0 0.0
    %265 = vmatprep.subr.mxu0 0.0
    %266 = vmatpush1.msra.mxu0 0.0
    %267 = vmatprep.subr.mxu0 0.0
    %268 = vmatpush1.msra.mxu0 0.0
    %269 = vmatprep.subr.mxu0 0.0
    %270 = vmatpush1.msra.mxu0 0.0
    %271 = vmatprep.subr.mxu0 0.0
    %272 = vmatpush1.msra.mxu0 0.0
    %273 = vmatprep.subr.mxu0 0.0
    %274 = vmatpush1.msra.mxu0 0.0
    %275 = vmatprep.mubr.f32.mxu0 0.0
    %276 = vmatmul.mubr.f32.gmra.mrb[0].mxu0 %v189
    %v277 = vpop.f32.mrb[0].mxu0
    %v278 = vadd.f32 %v210, %v277
    %v279 = vpop.f32.mrb[0].mxu0
    %280 = vmatprep.mubr.f32.mxu0 0.0
    %281 = vmatmul.mubr.f32.gmra.mrb[0].mxu0 %v190
    %v282 = vpop.f32.mrb[0].mxu0
    %v283 = vadd.f32 %v210, %v282
    %v284 = vpop.f32.mrb[0].mxu0
    %285 = vdwg.mxu0
    %286 = vadd.xlane.f32.xlu0 %v278
    %v287 = vpop.xlane.xlu0 %286
    %288 = vadd.xlane.f32.xlu0 %v283
    %v289 = vpop.xlane.xlu0 %288
    %v290 = vmul.f32 %v287, 0.03125
    %v291 = vmul.f32 %v289, 0.03125
    %v292 = vsub.f32 %v278, %v290
    %v293 = vsub.f32 %v283, %v291
    %v294 = vmul.f32 %v292, %v292
    %v295 = vmul.f32 %v293, %v293
    %296 = vadd.xlane.f32.xlu0 %v294
    %v297 = vpop.xlane.xlu0 %296
    %298 = vadd.xlane.f32.xlu0 %v295
    %v299 = vpop.xlane.xlu0 %298
    %v300 = vmul.f32 %v290, 96.0
    %v301 = vmul.f32 %v291, 96.0
    %v302 = vmul.f32 %v300, %v290
    %v303 = vmul.f32 %v301, %v291
    %v304 = vsub.f32 %v297, %v302
    %v305 = vsub.f32 %v299, %v303
    %v306 = vmul.f32 %v304, 0.03125
    %v307 = vmul.f32 %v305, 0.03125
    %v308 = vmax.f32 %v306, 0.0
    %v309 = vmax.f32 %v307, 0.0
    %v310 = vadd.f32 %v308, 1e-05
    %v311 = vadd.f32 %v309, 1e-05
    %v312 = vrsqrt.pop %v310
    %v313 = vrsqrt.pop %v311
    %v314 = vlaneseq
    %v315 = vshrl.u32 %v314, 7
    %v316 = vsub.s32 1, %v315
    %v317 = vrot.slane %v56, %v316
    %v318 = vmul.f32 %v317, %v312
    %v319 = vmul.f32 %v317, %v313
    %v320 = vmul.f32 %v292, %v318
    %v321 = vmul.f32 %v293, %v319
    %v322 = vlaneseq
    %v323 = vshrl.u32 %v322, 7
    %v324 = vsub.s32 2, %v323
    %v325 = vrot.slane %v56, %v324
    %v326 = vadd.f32 %v320, %v325
    %v327 = vadd.f32 %v321, %v325
    %v328 = vmax.f32 %v326, 0.0
    %v329 = vmax.f32 %v327, 0.0
    %v330 = vld [vmem:[#allocation5] sm:$0xff]
    %v331 = vld [vmem:[#allocation5 + $0x8] sm:$0xff]
    %v332 = vld [vmem:[#allocation5 + $0x10] sm:$0xff]
    %v333 = vld [vmem:[#allocation5 + $0x18] sm:$0xff]
    %v334 = vld [vmem:[#allocation5 + $0x20] sm:$0xff]
    %v335 = vld [vmem:[#allocation5 + $0x28] sm:$0xff]
    %v336 = vld [vmem:[#allocation5 + $0x30] sm:$0xff]
    %v337 = vld [vmem:[#allocation5 + $0x38] sm:$0xff]
    %v338 = vld [vmem:[#allocation5 + $0x40] sm:$0xff]
    %v339 = vld [vmem:[#allocation5 + $0x48] sm:$0xff]
    %v340 = vld [vmem:[#allocation5 + $0x50] sm:$0xff]
    %v341 = vld [vmem:[#allocation5 + $0x58] sm:$0xff]
    %v342 = vld [vmem:[#allocation5 + $0x60] sm:$0xff]
    %v343 = vld [vmem:[#allocation5 + $0x68] sm:$0xff]
    %v344 = vld [vmem:[#allocation5 + $0x70] sm:$0xff]
    %v345 = vld [vmem:[#allocation5 + $0x78] sm:$0xff]
    %v346 = vlaneseq
    %v347 = vshrl.u32 %v346, 7
    %v348 = vsub.s32 0, %v347
    %v349 = vrot.slane %v57, %v348
    %350 = vmatprep.subr.mxu0 0.0
    %351 = vmatpush1.msra.mxu0 %v330
    %352 = vmatprep.subr.mxu0 0.0
    %353 = vmatpush1.msra.mxu0 %v331
    %354 = vmatprep.subr.mxu0 0.0
    %355 = vmatpush1.msra.mxu0 %v332
    %356 = vmatprep.subr.mxu0 0.0
    %357 = vmatpush1.msra.mxu0 %v333
    %358 = vmatprep.subr.mxu0 0.0
    %359 = vmatpush1.msra.mxu0 %v334
    %360 = vmatprep.subr.mxu0 0.0
    %361 = vmatpush1.msra.mxu0 %v335
    %362 = vmatprep.subr.mxu0 0.0
    %363 = vmatpush1.msra.mxu0 %v336
    %364 = vmatprep.subr.mxu0 0.0
    %365 = vmatpush1.msra.mxu0 %v337
    %366 = vmatprep.subr.mxu0 0.0
    %367 = vmatpush1.msra.mxu0 %v338
    %368 = vmatprep.subr.mxu0 0.0
    %369 = vmatpush1.msra.mxu0 %v339
    %370 = vmatprep.subr.mxu0 0.0
    %371 = vmatpush1.msra.mxu0 %v340
    %372 = vmatprep.subr.mxu0 0.0
    %373 = vmatpush1.msra.mxu0 %v341
    %374 = vmatprep.subr.mxu0 0.0
    %375 = vmatpush1.msra.mxu0 %v342
    %376 = vmatprep.subr.mxu0 0.0
    %377 = vmatpush1.msra.mxu0 %v343
    %378 = vmatprep.subr.mxu0 0.0
    %379 = vmatpush1.msra.mxu0 %v344
    %380 = vmatprep.subr.mxu0 0.0
    %381 = vmatpush1.msra.mxu0 %v345
    %382 = vmatprep.subr.mxu0 0.0
    %383 = vmatpush1.msra.mxu0 0.0
    %384 = vmatprep.subr.mxu0 0.0
    %385 = vmatpush1.msra.mxu0 0.0
    %386 = vmatprep.subr.mxu0 0.0
    %387 = vmatpush1.msra.mxu0 0.0
    %388 = vmatprep.subr.mxu0 0.0
    %389 = vmatpush1.msra.mxu0 0.0
    %390 = vmatprep.subr.mxu0 0.0
    %391 = vmatpush1.msra.mxu0 0.0
    %392 = vmatprep.subr.mxu0 0.0
    %393 = vmatpush1.msra.mxu0 0.0
    %394 = vmatprep.subr.mxu0 0.0
    %395 = vmatpush1.msra.mxu0 0.0
    %396 = vmatprep.subr.mxu0 0.0
    %397 = vmatpush1.msra.mxu0 0.0
    %398 = vmatprep.subr.mxu0 0.0
    %399 = vmatpush1.msra.mxu0 0.0
    %400 = vmatprep.subr.mxu0 0.0
    %401 = vmatpush1.msra.mxu0 0.0
    %402 = vmatprep.subr.mxu0 0.0
    %403 = vmatpush1.msra.mxu0 0.0
    %404 = vmatprep.subr.mxu0 0.0
    %405 = vmatpush1.msra.mxu0 0.0
    %406 = vmatprep.subr.mxu0 0.0
    %407 = vmatpush1.msra.mxu0 0.0
    %408 = vmatprep.subr.mxu0 0.0
    %409 = vmatpush1.msra.mxu0 0.0
    %410 = vmatprep.subr.mxu0 0.0
    %411 = vmatpush1.msra.mxu0 0.0
    %412 = vmatprep.subr.mxu0 0.0
    %413 = vmatpush1.msra.mxu0 0.0
    %414 = vmatprep.mubr.f32.mxu0 0.0
    %415 = vmatmul.mubr.f32.gmra.mrb[0].mxu0 %v328
    %v416 = vpop.f32.mrb[0].mxu0
    %v417 = vadd.f32 %v349, %v416
    %v418 = vpop.f32.mrb[0].mxu0
    %419 = vmatprep.mubr.f32.mxu0 0.0
    %420 = vmatmul.mubr.f32.gmra.mrb[0].mxu0 %v329
    %v421 = vpop.f32.mrb[0].mxu0
    %v422 = vadd.f32 %v349, %v421
    %v423 = vpop.f32.mrb[0].mxu0
    %424 = vdwg.mxu0
    %425 = vst [vmem:[#allocation7] sm:$0xff] %v417
    %426 = vst [vmem:[#allocation7 + $0x8] sm:$0xff] %v422
    // Predicated region
    $region38: #{tpu_custom_call.1} parent=1 // pred_check
      _
    $region39: #{tpu_custom_call.1} parent=1 // pred_check_branch
      %428 = sbr.rel (0) target = $region41
    $region40: #{tpu_custom_call.1} parent=1 // pred_region
      %s430 = ssub.s32 256, 256
      %431 = vsyncadd [#allocation4], %s430
      %s432 = sshll.u32 [#allocation7], 4
      %s433 = int_to_ptr.vmem [resolvable:$true] %s432
      %438 = dma.vmem_to_hbm [thread:$0]  %s433, 256, %s7, [#allocation4], 128, 128, 8
    $region41: #{tpu_custom_call.1} parent=1 // pred_fallthru
      _
    // Predicated region
    $region42: #{tpu_custom_call.1} parent=1 // pred_check
      _
    $region43: #{tpu_custom_call.1} parent=1 // pred_check_branch
      %440 = sbr.rel (0) target = $region45
    $region44: #{tpu_custom_call.1} parent=1 // pred_region
      %441 = dma.done [#allocation4], 256
    $region45: #{tpu_custom_call.1} parent=1 // pred_fallthru
      _
    %442 = vsyncpa [#allocation3], 1
    %443 = vsyncpa [#allocation6], 1
    %444 = vsyncpa [#allocation4], 1

// kernel: tpu_custom_call.1
$region0: #{tpu_custom_call.1}
  #allocation0 [shape = 'u32[]', space=smem, size = 0x4, offset = 0x4, fixed_abs, tag = 'smem constant byte address 0x4 - core index']
  #allocation1 [shape = 'u32[144,128]{1,0:T(1,128)}', space=vmem, size = 0x12000, scoped, tag = 'internal scratch']
  %s0 = inlined_call_operand.vmem [shape: f32[16,8], index: 0, kind: input, shape index: {}]
  %s1 = inlined_call_operand.vmem [shape: f32[8,128], index: 1, kind: input, shape index: {}]
  %s2 = inlined_call_operand.vmem [shape: f32[8,128], index: 2, kind: input, shape index: {}]
  %s3 = inlined_call_operand.hbm [shape: f32[128,128], index: 3, kind: input, shape index: {}]
  %s4 = inlined_call_operand.vmem [shape: f32[8,128], index: 4, kind: input, shape index: {}]
  %s5 = inlined_call_operand.hbm [shape: f32[128,128], index: 5, kind: input, shape index: {}]
  %s6 = inlined_call_operand.vmem [shape: f32[8,128], index: 6, kind: input, shape index: {}]
  %s7 = inlined_call_operand.hbm [shape: f32[16,128], index: 7, kind: output, shape index: {}]
  %s8 = sld [smem:[#allocation0]]
  $region46: #{tpu_custom_call.1} parent=0
    _
  %s10 = ssub.s32 1, %s8
  %s11 = scalar_select 0, %s10, %s8
  $region1: #{tpu_custom_call.1} parent=0
    #allocation2 [shape = 'u8[65536]{0}', space=vmem, size = 0x10000, scoped, tag = 'input window, operand 3, single buffered']
    #allocation3 [shape = 's32[1]{0}', space=sflag, size = 0x4, scoped, tag = 'scoped memory for tpu_custom_call.1']
    #allocation4 [shape = 's32[1]{0}', space=sflag, size = 0x4, scoped, tag = 'scoped memory for tpu_custom_call.1']
    #allocation5 [shape = 'u8[65536]{0}', space=vmem, size = 0x10000, scoped, tag = 'input window, operand 5, single buffered']
    #allocation6 [shape = 's32[1]{0}', space=sflag, size = 0x4, scoped, tag = 'scoped memory for tpu_custom_call.1']
    #allocation7 [shape = 'u8[8192]{0}', space=vmem, size = 0x2000, scoped, tag = 'output window, operand 0, single buffered']
    %12 = vsyncpa [#allocation3], 0
    %13 = vsyncpa [#allocation6], 0
    %14 = vsyncpa [#allocation4], 0
    // Predicated region
    $region2: #{tpu_custom_call.1} parent=1 // pred_check
      _
    $region3: #{tpu_custom_call.1} parent=1 // pred_check_branch
      %16 = sbr.rel (0) target = $region5
    $region4: #{tpu_custom_call.1} parent=1 // pred_region
      _
    $region5: #{tpu_custom_call.1} parent=1 // pred_fallthru
      _
    // Predicated region
    $region6: #{tpu_custom_call.1} parent=1 // pred_check
      _
    $region7: #{tpu_custom_call.1} parent=1 // pred_check_branch
      %18 = sbr.rel (0) target = $region9
    $region8: #{tpu_custom_call.1} parent=1 // pred_region
      _
    $region9: #{tpu_custom_call.1} parent=1 // pred_fallthru
      _
    // Predicated region
    $region10: #{tpu_custom_call.1} parent=1 // pred_check
      _
    $region11: #{tpu_custom_call.1} parent=1 // pred_check_branch
      %20 = sbr.rel (0) target = $region13
    $region12: #{tpu_custom_call.1} parent=1 // pred_region
      _
    $region13: #{tpu_custom_call.1} parent=1 // pred_fallthru
      _
    // Predicated region
    $region14: #{tpu_custom_call.1} parent=1 // pred_check
      _
    $region15: #{tpu_custom_call.1} parent=1 // pred_check_branch
      %22 = sbr.rel (0) target = $region17
    $region16: #{tpu_custom_call.1} parent=1 // pred_region
      %s24 = ssub.s32 2048, 2048
      %25 = vsyncadd [#allocation3], %s24
      %s26 = sshll.u32 [#allocation2], 4
      %s27 = int_to_ptr.vmem [resolvable:$true] %s26
      %32 = dma.hbm_to_vmem [thread:$0]  %s3, 2048, %s27, [#allocation3], 128, 128, 8
    $region17: #{tpu_custom_call.1} parent=1 // pred_fallthru
      _
    // Predicated region
    $region18: #{tpu_custom_call.1} parent=1 // pred_check
      _
    $region19: #{tpu_custom_call.1} parent=1 // pred_check_branch
      %34 = sbr.rel (0) target = $region21
    $region20: #{tpu_custom_call.1} parent=1 // pred_region
      _
    $region21: #{tpu_custom_call.1} parent=1 // pred_fallthru
      _
    // Predicated region
    $region22: #{tpu_custom_call.1} parent=1 // pred_check
      _
    $region23: #{tpu_custom_call.1} parent=1 // pred_check_branch
      %36 = sbr.rel (0) target = $region25
    $region24: #{tpu_custom_call.1} parent=1 // pred_region
      %s38 = ssub.s32 2048, 2048
      %39 = vsyncadd [#allocation6], %s38
      %s40 = sshll.u32 [#allocation5], 4
      %s41 = int_to_ptr.vmem [resolvable:$true] %s40
      %46 = dma.hbm_to_vmem [thread:$0]  %s5, 2048, %s41, [#allocation6], 128, 128, 8
    $region25: #{tpu_custom_call.1} parent=1 // pred_fallthru
      _
    // Predicated region
    $region26: #{tpu_custom_call.1} parent=1 // pred_check
      _
    $region27: #{tpu_custom_call.1} parent=1 // pred_check_branch
      %48 = sbr.rel (0) target = $region29
    $region28: #{tpu_custom_call.1} parent=1 // pred_region
      _
    $region29: #{tpu_custom_call.1} parent=1 // pred_fallthru
      _
    // Predicated region
    $region30: #{tpu_custom_call.1} parent=1 // pred_check
      _
    $region31: #{tpu_custom_call.1} parent=1 // pred_check_branch
      %50 = sbr.rel (0) target = $region33
    $region32: #{tpu_custom_call.1} parent=1 // pred_region
      %51 = dma.done [#allocation3], 2048
    $region33: #{tpu_custom_call.1} parent=1 // pred_fallthru
      _
    // Predicated region
    $region34: #{tpu_custom_call.1} parent=1 // pred_check
      _
    $region35: #{tpu_custom_call.1} parent=1 // pred_check_branch
      %53 = sbr.rel (0) target = $region37
    $region36: #{tpu_custom_call.1} parent=1 // pred_region
      %54 = dma.done [#allocation6], 2048
    $region37: #{tpu_custom_call.1} parent=1 // pred_fallthru
      _
    %v55 = vld [vmem:[%s2] sm:$0xff]
    %v56 = vld [vmem:[%s4] sm:$0xff]
    %v57 = vld [vmem:[%s6] sm:$0xff]
    %v58 = vld [vmem:[%s0] sm:$0xff]
    %v59 = vld [vmem:[%s0 + $0x8] sm:$0xff]
    %v60 = vld [vmem:[%s1] sm:$0xff]
    %v61 = vlaneseq
    %v62 = vshrl.u32 %v61, 7
    %v63 = vsub.s32 0, %v62
    %v64 = vrot.slane %v55, %v63
    %vm65 = vcmask 64512
    %v67 = vsel %vm65, %v58, 0
    %v70 = vsel %vm65, %v59, 0
    %72 = vmatprep.subr.mxu0 0.0
    %73 = vmatpush1.msra.mxu0 %v60
    %74 = vmatprep.subr.mxu0 0.0
    %75 = vmatpush1.msra.mxu0 0.0
    %76 = vmatprep.subr.mxu0 0.0
    %77 = vmatpush1.msra.mxu0 0.0
    %78 = vmatprep.subr.mxu0 0.0
    %79 = vmatpush1.msra.mxu0 0.0
    %80 = vmatprep.subr.mxu0 0.0
    %81 = vmatpush1.msra.mxu0 0.0
    %82 = vmatprep.subr.mxu0 0.0
    %83 = vmatpush1.msra.mxu0 0.0
    %84 = vmatprep.subr.mxu0 0.0
    %85 = vmatpush1.msra.mxu0 0.0
    %86 = vmatprep.subr.mxu0 0.0
    %87 = vmatpush1.msra.mxu0 0.0
    %88 = vmatprep.subr.mxu0 0.0
    %89 = vmatpush1.msra.mxu0 0.0
    %90 = vmatprep.subr.mxu0 0.0
    %91 = vmatpush1.msra.mxu0 0.0
    %92 = vmatprep.subr.mxu0 0.0
    %93 = vmatpush1.msra.mxu0 0.0
    %94 = vmatprep.subr.mxu0 0.0
    %95 = vmatpush1.msra.mxu0 0.0
    %96 = vmatprep.subr.mxu0 0.0
    %97 = vmatpush1.msra.mxu0 0.0
    %98 = vmatprep.subr.mxu0 0.0
    %99 = vmatpush1.msra.mxu0 0.0
    %100 = vmatprep.subr.mxu0 0.0
    %101 = vmatpush1.msra.mxu0 0.0
    %102 = vmatprep.subr.mxu0 0.0
    %103 = vmatpush1.msra.mxu0 0.0
    %104 = vmatprep.subr.mxu0 0.0
    %105 = vmatpush1.msra.mxu0 0.0
    %106 = vmatprep.subr.mxu0 0.0
    %107 = vmatpush1.msra.mxu0 0.0
    %108 = vmatprep.subr.mxu0 0.0
    %109 = vmatpush1.msra.mxu0 0.0
    %110 = vmatprep.subr.mxu0 0.0
    %111 = vmatpush1.msra.mxu0 0.0
    %112 = vmatprep.subr.mxu0 0.0
    %113 = vmatpush1.msra.mxu0 0.0
    %114 = vmatprep.subr.mxu0 0.0
    %115 = vmatpush1.msra.mxu0 0.0
    %116 = vmatprep.subr.mxu0 0.0
    %117 = vmatpush1.msra.mxu0 0.0
    %118 = vmatprep.subr.mxu0 0.0
    %119 = vmatpush1.msra.mxu0 0.0
    %120 = vmatprep.subr.mxu0 0.0
    %121 = vmatpush1.msra.mxu0 0.0
    %122 = vmatprep.subr.mxu0 0.0
    %123 = vmatpush1.msra.mxu0 0.0
    %124 = vmatprep.subr.mxu0 0.0
    %125 = vmatpush1.msra.mxu0 0.0
    %126 = vmatprep.subr.mxu0 0.0
    %127 = vmatpush1.msra.mxu0 0.0
    %128 = vmatprep.subr.mxu0 0.0
    %129 = vmatpush1.msra.mxu0 0.0
    %130 = vmatprep.subr.mxu0 0.0
    %131 = vmatpush1.msra.mxu0 0.0
    %132 = vmatprep.subr.mxu0 0.0
    %133 = vmatpush1.msra.mxu0 0.0
    %134 = vmatprep.subr.mxu0 0.0
    %135 = vmatpush1.msra.mxu0 0.0
    %136 = vmatprep.mubr.f32.mxu0 0.0
    %137 = vmatmul.mubr.f32.gmra.mrb[0].mxu0 %v67
    %v138 = vpop.f32.mrb[0].mxu0
    %v139 = vadd.f32 %v64, %v138
    %v140 = vpop.f32.mrb[0].mxu0
    %141 = vmatprep.mubr.f32.mxu0 0.0
    %142 = vmatmul.mubr.f32.gmra.mrb[0].mxu0 %v70
    %v143 = vpop.f32.mrb[0].mxu0
    %v144 = vadd.f32 %v64, %v143
    %v145 = vpop.f32.mrb[0].mxu0
    %146 = vdwg.mxu0
    %147 = vadd.xlane.f32.xlu0 %v139
    %v148 = vpop.xlane.xlu0 %147
    %149 = vadd.xlane.f32.xlu0 %v144
    %v150 = vpop.xlane.xlu0 %149
    %v151 = vmul.f32 %v148, 0.03125
    %v152 = vmul.f32 %v150, 0.03125
    %v153 = vsub.f32 %v139, %v151
    %v154 = vsub.f32 %v144, %v152
    %v155 = vmul.f32 %v153, %v153
    %v156 = vmul.f32 %v154, %v154
    %157 = vadd.xlane.f32.xlu0 %v155
    %v158 = vpop.xlane.xlu0 %157
    %159 = vadd.xlane.f32.xlu0 %v156
    %v160 = vpop.xlane.xlu0 %159
    %v161 = vmul.f32 %v151, 96.0
    %v162 = vmul.f32 %v152, 96.0
    %v163 = vmul.f32 %v161, %v151
    %v164 = vmul.f32 %v162, %v152
    %v165 = vsub.f32 %v158, %v163
    %v166 = vsub.f32 %v160, %v164
    %v167 = vmul.f32 %v165, 0.03125
    %v168 = vmul.f32 %v166, 0.03125
    %v169 = vmax.f32 %v167, 0.0
    %v170 = vmax.f32 %v168, 0.0
    %v171 = vadd.f32 %v169, 1e-05
    %v172 = vadd.f32 %v170, 1e-05
    %v173 = vrsqrt.pop %v171
    %v174 = vrsqrt.pop %v172
    %v175 = vlaneseq
    %v176 = vshrl.u32 %v175, 7
    %v177 = vsub.s32 1, %v176
    %v178 = vrot.slane %v55, %v177
    %v179 = vmul.f32 %v178, %v173
    %v180 = vmul.f32 %v178, %v174
    %v181 = vmul.f32 %v153, %v179
    %v182 = vmul.f32 %v154, %v180
    %v183 = vlaneseq
    %v184 = vshrl.u32 %v183, 7
    %v185 = vsub.s32 2, %v184
    %v186 = vrot.slane %v55, %v185
    %v187 = vadd.f32 %v181, %v186
    %v188 = vadd.f32 %v182, %v186
    %v189 = vmax.f32 %v187, 0.0
    %v190 = vmax.f32 %v188, 0.0
    %v191 = vld [vmem:[#allocation2] sm:$0xff]
    %v192 = vld [vmem:[#allocation2 + $0x8] sm:$0xff]
    %v193 = vld [vmem:[#allocation2 + $0x10] sm:$0xff]
    %v194 = vld [vmem:[#allocation2 + $0x18] sm:$0xff]
    %v195 = vld [vmem:[#allocation2 + $0x20] sm:$0xff]
    %v196 = vld [vmem:[#allocation2 + $0x28] sm:$0xff]
    %v197 = vld [vmem:[#allocation2 + $0x30] sm:$0xff]
    %v198 = vld [vmem:[#allocation2 + $0x38] sm:$0xff]
    %v199 = vld [vmem:[#allocation2 + $0x40] sm:$0xff]
    %v200 = vld [vmem:[#allocation2 + $0x48] sm:$0xff]
    %v201 = vld [vmem:[#allocation2 + $0x50] sm:$0xff]
    %v202 = vld [vmem:[#allocation2 + $0x58] sm:$0xff]
    %v203 = vld [vmem:[#allocation2 + $0x60] sm:$0xff]
    %v204 = vld [vmem:[#allocation2 + $0x68] sm:$0xff]
    %v205 = vld [vmem:[#allocation2 + $0x70] sm:$0xff]
    %v206 = vld [vmem:[#allocation2 + $0x78] sm:$0xff]
    %v207 = vlaneseq
    %v208 = vshrl.u32 %v207, 7
    %v209 = vsub.s32 0, %v208
    %v210 = vrot.slane %v56, %v209
    %211 = vmatprep.subr.mxu0 0.0
    %212 = vmatpush1.msra.mxu0 %v191
    %213 = vmatprep.subr.mxu0 0.0
    %214 = vmatpush1.msra.mxu0 %v192
    %215 = vmatprep.subr.mxu0 0.0
    %216 = vmatpush1.msra.mxu0 %v193
    %217 = vmatprep.subr.mxu0 0.0
    %218 = vmatpush1.msra.mxu0 %v194
    %219 = vmatprep.subr.mxu0 0.0
    %220 = vmatpush1.msra.mxu0 %v195
    %221 = vmatprep.subr.mxu0 0.0
    %222 = vmatpush1.msra.mxu0 %v196
    %223 = vmatprep.subr.mxu0 0.0
    %224 = vmatpush1.msra.mxu0 %v197
    %225 = vmatprep.subr.mxu0 0.0
    %226 = vmatpush1.msra.mxu0 %v198
    %227 = vmatprep.subr.mxu0 0.0
    %228 = vmatpush1.msra.mxu0 %v199
    %229 = vmatprep.subr.mxu0 0.0
    %230 = vmatpush1.msra.mxu0 %v200
    %231 = vmatprep.subr.mxu0 0.0
    %232 = vmatpush1.msra.mxu0 %v201
    %233 = vmatprep.subr.mxu0 0.0
    %234 = vmatpush1.msra.mxu0 %v202
    %235 = vmatprep.subr.mxu0 0.0
    %236 = vmatpush1.msra.mxu0 %v203
    %237 = vmatprep.subr.mxu0 0.0
    %238 = vmatpush1.msra.mxu0 %v204
    %239 = vmatprep.subr.mxu0 0.0
    %240 = vmatpush1.msra.mxu0 %v205
    %241 = vmatprep.subr.mxu0 0.0
    %242 = vmatpush1.msra.mxu0 %v206
    %243 = vmatprep.subr.mxu0 0.0
    %244 = vmatpush1.msra.mxu0 0.0
    %245 = vmatprep.subr.mxu0 0.0
    %246 = vmatpush1.msra.mxu0 0.0
    %247 = vmatprep.subr.mxu0 0.0
    %248 = vmatpush1.msra.mxu0 0.0
    %249 = vmatprep.subr.mxu0 0.0
    %250 = vmatpush1.msra.mxu0 0.0
    %251 = vmatprep.subr.mxu0 0.0
    %252 = vmatpush1.msra.mxu0 0.0
    %253 = vmatprep.subr.mxu0 0.0
    %254 = vmatpush1.msra.mxu0 0.0
    %255 = vmatprep.subr.mxu0 0.0
    %256 = vmatpush1.msra.mxu0 0.0
    %257 = vmatprep.subr.mxu0 0.0
    %258 = vmatpush1.msra.mxu0 0.0
    %259 = vmatprep.subr.mxu0 0.0
    %260 = vmatpush1.msra.mxu0 0.0
    %261 = vmatprep.subr.mxu0 0.0
    %262 = vmatpush1.msra.mxu0 0.0
    %263 = vmatprep.subr.mxu0 0.0
    %264 = vmatpush1.msra.mxu0 0.0
    %265 = vmatprep.subr.mxu0 0.0
    %266 = vmatpush1.msra.mxu0 0.0
    %267 = vmatprep.subr.mxu0 0.0
    %268 = vmatpush1.msra.mxu0 0.0
    %269 = vmatprep.subr.mxu0 0.0
    %270 = vmatpush1.msra.mxu0 0.0
    %271 = vmatprep.subr.mxu0 0.0
    %272 = vmatpush1.msra.mxu0 0.0
    %273 = vmatprep.subr.mxu0 0.0
    %274 = vmatpush1.msra.mxu0 0.0
    %275 = vmatprep.mubr.f32.mxu0 0.0
    %276 = vmatmul.mubr.f32.gmra.mrb[0].mxu0 %v189
    %v277 = vpop.f32.mrb[0].mxu0
    %v278 = vadd.f32 %v210, %v277
    %v279 = vpop.f32.mrb[0].mxu0
    %280 = vmatprep.mubr.f32.mxu0 0.0
    %281 = vmatmul.mubr.f32.gmra.mrb[0].mxu0 %v190
    %v282 = vpop.f32.mrb[0].mxu0
    %v283 = vadd.f32 %v210, %v282
    %v284 = vpop.f32.mrb[0].mxu0
    %285 = vdwg.mxu0
    %286 = vadd.xlane.f32.xlu0 %v278
    %v287 = vpop.xlane.xlu0 %286
    %288 = vadd.xlane.f32.xlu0 %v283
    %v289 = vpop.xlane.xlu0 %288
    %v290 = vmul.f32 %v287, 0.03125
    %v291 = vmul.f32 %v289, 0.03125
    %v292 = vsub.f32 %v278, %v290
    %v293 = vsub.f32 %v283, %v291
    %v294 = vmul.f32 %v292, %v292
    %v295 = vmul.f32 %v293, %v293
    %296 = vadd.xlane.f32.xlu0 %v294
    %v297 = vpop.xlane.xlu0 %296
    %298 = vadd.xlane.f32.xlu0 %v295
    %v299 = vpop.xlane.xlu0 %298
    %v300 = vmul.f32 %v290, 96.0
    %v301 = vmul.f32 %v291, 96.0
    %v302 = vmul.f32 %v300, %v290
    %v303 = vmul.f32 %v301, %v291
    %v304 = vsub.f32 %v297, %v302
    %v305 = vsub.f32 %v299, %v303
    %v306 = vmul.f32 %v304, 0.03125
    %v307 = vmul.f32 %v305, 0.03125
    %v308 = vmax.f32 %v306, 0.0
    %v309 = vmax.f32 %v307, 0.0
    %v310 = vadd.f32 %v308, 1e-05
    %v311 = vadd.f32 %v309, 1e-05
    %v312 = vrsqrt.pop %v310
    %v313 = vrsqrt.pop %v311
    %v314 = vlaneseq
    %v315 = vshrl.u32 %v314, 7
    %v316 = vsub.s32 1, %v315
    %v317 = vrot.slane %v56, %v316
    %v318 = vmul.f32 %v317, %v312
    %v319 = vmul.f32 %v317, %v313
    %v320 = vmul.f32 %v292, %v318
    %v321 = vmul.f32 %v293, %v319
    %v322 = vlaneseq
    %v323 = vshrl.u32 %v322, 7
    %v324 = vsub.s32 2, %v323
    %v325 = vrot.slane %v56, %v324
    %v326 = vadd.f32 %v320, %v325
    %v327 = vadd.f32 %v321, %v325
    %v328 = vmax.f32 %v326, 0.0
    %v329 = vmax.f32 %v327, 0.0
    %v330 = vld [vmem:[#allocation5] sm:$0xff]
    %v331 = vld [vmem:[#allocation5 + $0x8] sm:$0xff]
    %v332 = vld [vmem:[#allocation5 + $0x10] sm:$0xff]
    %v333 = vld [vmem:[#allocation5 + $0x18] sm:$0xff]
    %v334 = vld [vmem:[#allocation5 + $0x20] sm:$0xff]
    %v335 = vld [vmem:[#allocation5 + $0x28] sm:$0xff]
    %v336 = vld [vmem:[#allocation5 + $0x30] sm:$0xff]
    %v337 = vld [vmem:[#allocation5 + $0x38] sm:$0xff]
    %v338 = vld [vmem:[#allocation5 + $0x40] sm:$0xff]
    %v339 = vld [vmem:[#allocation5 + $0x48] sm:$0xff]
    %v340 = vld [vmem:[#allocation5 + $0x50] sm:$0xff]
    %v341 = vld [vmem:[#allocation5 + $0x58] sm:$0xff]
    %v342 = vld [vmem:[#allocation5 + $0x60] sm:$0xff]
    %v343 = vld [vmem:[#allocation5 + $0x68] sm:$0xff]
    %v344 = vld [vmem:[#allocation5 + $0x70] sm:$0xff]
    %v345 = vld [vmem:[#allocation5 + $0x78] sm:$0xff]
    %v346 = vlaneseq
    %v347 = vshrl.u32 %v346, 7
    %v348 = vsub.s32 0, %v347
    %v349 = vrot.slane %v57, %v348
    %350 = vmatprep.subr.mxu0 0.0
    %351 = vmatpush1.msra.mxu0 %v330
    %352 = vmatprep.subr.mxu0 0.0
    %353 = vmatpush1.msra.mxu0 %v331
    %354 = vmatprep.subr.mxu0 0.0
    %355 = vmatpush1.msra.mxu0 %v332
    %356 = vmatprep.subr.mxu0 0.0
    %357 = vmatpush1.msra.mxu0 %v333
    %358 = vmatprep.subr.mxu0 0.0
    %359 = vmatpush1.msra.mxu0 %v334
    %360 = vmatprep.subr.mxu0 0.0
    %361 = vmatpush1.msra.mxu0 %v335
    %362 = vmatprep.subr.mxu0 0.0
    %363 = vmatpush1.msra.mxu0 %v336
    %364 = vmatprep.subr.mxu0 0.0
    %365 = vmatpush1.msra.mxu0 %v337
    %366 = vmatprep.subr.mxu0 0.0
    %367 = vmatpush1.msra.mxu0 %v338
    %368 = vmatprep.subr.mxu0 0.0
    %369 = vmatpush1.msra.mxu0 %v339
    %370 = vmatprep.subr.mxu0 0.0
    %371 = vmatpush1.msra.mxu0 %v340
    %372 = vmatprep.subr.mxu0 0.0
    %373 = vmatpush1.msra.mxu0 %v341
    %374 = vmatprep.subr.mxu0 0.0
    %375 = vmatpush1.msra.mxu0 %v342
    %376 = vmatprep.subr.mxu0 0.0
    %377 = vmatpush1.msra.mxu0 %v343
    %378 = vmatprep.subr.mxu0 0.0
    %379 = vmatpush1.msra.mxu0 %v344
    %380 = vmatprep.subr.mxu0 0.0
    %381 = vmatpush1.msra.mxu0 %v345
    %382 = vmatprep.subr.mxu0 0.0
    %383 = vmatpush1.msra.mxu0 0.0
    %384 = vmatprep.subr.mxu0 0.0
    %385 = vmatpush1.msra.mxu0 0.0
    %386 = vmatprep.subr.mxu0 0.0
    %387 = vmatpush1.msra.mxu0 0.0
    %388 = vmatprep.subr.mxu0 0.0
    %389 = vmatpush1.msra.mxu0 0.0
    %390 = vmatprep.subr.mxu0 0.0
    %391 = vmatpush1.msra.mxu0 0.0
    %392 = vmatprep.subr.mxu0 0.0
    %393 = vmatpush1.msra.mxu0 0.0
    %394 = vmatprep.subr.mxu0 0.0
    %395 = vmatpush1.msra.mxu0 0.0
    %396 = vmatprep.subr.mxu0 0.0
    %397 = vmatpush1.msra.mxu0 0.0
    %398 = vmatprep.subr.mxu0 0.0
    %399 = vmatpush1.msra.mxu0 0.0
    %400 = vmatprep.subr.mxu0 0.0
    %401 = vmatpush1.msra.mxu0 0.0
    %402 = vmatprep.subr.mxu0 0.0
    %403 = vmatpush1.msra.mxu0 0.0
    %404 = vmatprep.subr.mxu0 0.0
    %405 = vmatpush1.msra.mxu0 0.0
    %406 = vmatprep.subr.mxu0 0.0
    %407 = vmatpush1.msra.mxu0 0.0
    %408 = vmatprep.subr.mxu0 0.0
    %409 = vmatpush1.msra.mxu0 0.0
    %410 = vmatprep.subr.mxu0 0.0
    %411 = vmatpush1.msra.mxu0 0.0
    %412 = vmatprep.subr.mxu0 0.0
    %413 = vmatpush1.msra.mxu0 0.0
    %414 = vmatprep.mubr.f32.mxu0 0.0
    %415 = vmatmul.mubr.f32.gmra.mrb[0].mxu0 %v328
    %v416 = vpop.f32.mrb[0].mxu0
    %v417 = vadd.f32 %v349, %v416
    %v418 = vpop.f32.mrb[0].mxu0
    %419 = vmatprep.mubr.f32.mxu0 0.0
    %420 = vmatmul.mubr.f32.gmra.mrb[0].mxu0 %v329
    %v421 = vpop.f32.mrb[0].mxu0
    %v422 = vadd.f32 %v349, %v421
    %v423 = vpop.f32.mrb[0].mxu0
    %424 = vdwg.mxu0
    %425 = vst [vmem:[#allocation7] sm:$0xff] %v417
    %426 = vst [vmem:[#allocation7 + $0x8] sm:$0xff] %v422
    // Predicated region
    $region38: #{tpu_custom_call.1} parent=1 // pred_check
      _
    $region39: #{tpu_custom_call.1} parent=1 // pred_check_branch
      %428 = sbr.rel (0) target = $region41
    $region40: #{tpu_custom_call.1} parent=1 // pred_region
      %s430 = ssub.s32 256, 256
      %431 = vsyncadd [#allocation4], %s430
      %s432 = sshll.u32 [#allocation7], 4
      %s433 = int_to_ptr.vmem [resolvable:$true] %s432
      %438 = dma.vmem_to_hbm [thread:$0]  %s433, 256, %s7, [#allocation4], 128, 128, 8
    $region41: #{tpu_custom_call.1} parent=1 // pred_fallthru
      _
    // Predicated region
    $region42: #{tpu_custom_call.1} parent=1 // pred_check
      _
    $region43: #{tpu_custom_call.1} parent=1 // pred_check_branch
      %440 = sbr.rel (0) target = $region45
    $region44: #{tpu_custom_call.1} parent=1 // pred_region
      %441 = dma.done [#allocation4], 256
    $region45: #{tpu_custom_call.1} parent=1 // pred_fallthru
      _
    %442 = vsyncpa [#allocation3], 1
    %443 = vsyncpa [#allocation6], 1
    %444 = vsyncpa [#allocation4], 1

</llo_original>
